<compile_context>
chip_gen: v7x
topology: tpu7x:2x2x1
jax: 0.10.0
libtpu: 0.0.40
codegen_flags: <defaults>
</compile_context>

<pallas_src>
from functools import partial

import jax
import jax.numpy as jnp
from jax.experimental import pallas as pl
from jax.experimental.pallas import tpu as pltpu


# ----------------------------------------------------------------------------
# helpers
# ----------------------------------------------------------------------------
def _round_up(x, m):
    return (x + m - 1) // m * m


def _pick_tm(m, target=512):
    """Balanced row-tile: ~target rows, no large round-up waste, multiple of 8."""
    nt = max(1, -(-m // target))
    return _round_up(-(-m // nt), 8)


_VMEM_LIMIT = 32 * 1024 * 1024   # explicit (v5e scoped default is 16 MiB), safe on v7x


# ----------------------------------------------------------------------------
# Kernel A: plain GEMM, full-K-resident weight, fused bias + act, f32 accumulate
# ----------------------------------------------------------------------------
def _gemm_bias_act_kernel(x_ref, w_ref, b_ref, o_ref, *, act, scale):
    acc = jnp.dot(x_ref[...], w_ref[...], preferred_element_type=jnp.float32)
    r = acc + b_ref[...]
    if act == "relu":
        r = jnp.maximum(r, 0.0)
    elif act == "sigmoid":
        r = jax.nn.sigmoid(r)
    if scale != 1.0:
        r = r * scale
    o_ref[...] = r.astype(o_ref.dtype)


def pallas_gemm(x, w, b, *, tm, act="none", scale=1.0, tn=None,
                out_dtype=jnp.float32):
    """x: (Mp, Kp) bf16 (pre-padded by producer), w: (Kp, Np) bf16, b: (1, Np) f32."""
    Mp, Kp = x.shape
    Np = w.shape[1]
    assert Mp % tm == 0 and w.shape[0] == Kp
    if tn is None:
        tn = Np if Np <= 512 else 128
    assert Np % tn == 0
    return pl.pallas_call(
        partial(_gemm_bias_act_kernel, act=act, scale=scale),
        out_shape=jax.ShapeDtypeStruct((Mp, Np), out_dtype),
        grid_spec=pltpu.PrefetchScalarGridSpec(
            num_scalar_prefetch=0,
            grid=(Mp // tm, Np // tn),
            in_specs=[pl.BlockSpec((tm, Kp), lambda i, j: (i, 0)),
                      pl.BlockSpec((Kp, tn), lambda i, j: (0, j)),
                      pl.BlockSpec((1, tn), lambda i, j: (0, j))],
            out_specs=pl.BlockSpec((tm, tn), lambda i, j: (i, j)),
        ),
        compiler_params=pltpu.CompilerParams(
            dimension_semantics=("parallel", "parallel"),
            vmem_limit_bytes=_VMEM_LIMIT),
    )(x, w, b)


# ----------------------------------------------------------------------------
# Kernel B: fused 3x3 conv GEMM on the flattened, halo-padded pixel space.
#   X (guarded rows, C) stays fully resident in VMEM; 9 shifted row slices are
#   multiplied against 9 (C, N) weight blocks on the MXU (f32 accumulate).
#   Epilogue: optional residual add, bias, per-output act/scale, row mask,
#   and multiple column-split outputs (so one pass feeds several heads).
# ----------------------------------------------------------------------------
def _conv3x3_kernel(*refs, offs, tm, has_res, has_mask, col_splits, acts, scales):
    x_ref, w_ref, b_ref = refs[0], refs[1], refs[2]
    idx = 3
    res_ref = None
    if has_res:
        res_ref = refs[idx]
        idx += 1
    mask_ref = None
    if has_mask:
        mask_ref = refs[idx]
        idx += 1
    out_refs = refs[idx:]

    row0 = pl.program_id(0) * tm
    acc = jnp.dot(x_ref[pl.ds(row0 + offs[0], tm), :], w_ref[0],
                  preferred_element_type=jnp.float32)
    for k in range(1, len(offs)):
        acc = acc + jnp.dot(x_ref[pl.ds(row0 + offs[k], tm), :], w_ref[k],
                            preferred_element_type=jnp.float32)
    if has_res:
        acc = acc + res_ref[...]
    r_all = acc + b_ref[...]

    for o_ref, (c0, cw), act, scale in zip(out_refs, col_splits, acts, scales):
        r = r_all[:, c0:c0 + cw]
        if act == "relu":
            r = jnp.maximum(r, 0.0)
        elif act == "sigmoid":
            r = jax.nn.sigmoid(r)
        if scale != 1.0:
            r = r * scale
        if has_mask:
            # where (not multiply): exact zeros at halo / padding rows even if
            # upstream guard rows held garbage -> correct zero-padding downstream.
            r = jnp.where(mask_ref[...] > 0.0, r, 0.0)
        o_ref[...] = r.astype(o_ref.dtype)


def _out_index_map(guard):
    if guard:
        return lambda i: (i + 1, 0)   # output carries a tm-row guard block
    return lambda i: (i, 0)


def conv3x3(x_guarded, w, b, *, Mp, tm, offs, mask=None, res=None,
            col_splits, acts, scales, out_dtypes, out_guard):
    """x_guarded: (tm + Mp + tm, C) bf16, w: (9, C, Ntot) bf16, b: (1, Ntot) f32."""
    ntot = w.shape[2]
    in_arrays = [x_guarded, w, b]
    in_specs = [pl.BlockSpec(x_guarded.shape, lambda i: (0, 0)),     # full-resident
                pl.BlockSpec(w.shape, lambda i: (0, 0, 0)),          # full-resident
                pl.BlockSpec((1, ntot), lambda i: (0, 0))]
    if res is not None:
        in_arrays.append(res)
        in_specs.append(pl.BlockSpec((tm, ntot), lambda i: (i, 0)))
    if mask is not None:
        in_arrays.append(mask)
        in_specs.append(pl.BlockSpec((tm, 1), lambda i: (i, 0)))

    out_shapes, out_specs = [], []
    for (c0, cw), dt, g in zip(col_splits, out_dtypes, out_guard):
        rows = Mp + (2 * tm if g else 0)
        out_shapes.append(jax.ShapeDtypeStruct((rows, cw), dt))
        out_specs.append(pl.BlockSpec((tm, cw), _out_index_map(g)))

    outs = pl.pallas_call(
        partial(_conv3x3_kernel, offs=offs, tm=tm,
                has_res=res is not None, has_mask=mask is not None,
                col_splits=col_splits, acts=acts, scales=scales),
        out_shape=tuple(out_shapes),
        grid_spec=pltpu.PrefetchScalarGridSpec(
            num_scalar_prefetch=0,
            grid=(Mp // tm,),
            in_specs=in_specs,
            out_specs=tuple(out_specs),
        ),
        compiler_params=pltpu.CompilerParams(
            dimension_semantics=("parallel",),
            vmem_limit_bytes=_VMEM_LIMIT),
    )(*in_arrays)
    if not isinstance(outs, (tuple, list)):
        outs = (outs,)
    return tuple(outs)


# ----------------------------------------------------------------------------
# Kernel C: UpMaskNet 1x1 conv fused with softmax convex upsample.
#   logits = 0.25 * (um_hidden @ W2 + b2) computed in VMEM (never stored to
#   HBM), streamed 9-tap softmax + convex combination with depth neighbours.
# ----------------------------------------------------------------------------
def _upmask_convex_kernel(x_ref, w_ref, b_ref, nb_ref, o_ref, *, rr, scale):
    logits = jnp.dot(x_ref[...], w_ref[...], preferred_element_type=jnp.float32)
    logits = (logits + b_ref[...]) * scale
    mx = logits[:, 0:rr]
    for k in range(1, 9):
        mx = jnp.maximum(mx, logits[:, k * rr:(k + 1) * rr])
    den = jnp.zeros_like(mx)
    acc = jnp.zeros_like(mx)
    for k in range(9):
        e = jnp.exp(logits[:, k * rr:(k + 1) * rr] - mx)
        den = den + e
        acc = acc + e * nb_ref[:, k:k + 1]
    o_ref[...] = (acc * pl.reciprocal(den, approx=True)).astype(o_ref.dtype)


def upmask_convex(um_hidden, w, b, nbrs, *, Mp, tm, rr, scale=0.25):
    kdim = um_hidden.shape[1]
    npad = w.shape[1]
    return pl.pallas_call(
        partial(_upmask_convex_kernel, rr=rr, scale=scale),
        out_shape=jax.ShapeDtypeStruct((Mp, rr), jnp.float32),
        grid_spec=pltpu.PrefetchScalarGridSpec(
            num_scalar_prefetch=0,
            grid=(Mp // tm,),
            in_specs=[pl.BlockSpec((tm, kdim), lambda i: (i, 0)),
                      pl.BlockSpec((kdim, npad), lambda i: (0, 0)),
                      pl.BlockSpec((1, npad), lambda i: (0, 0)),
                      pl.BlockSpec((tm, 9), lambda i: (i, 0))],
            out_specs=pl.BlockSpec((tm, rr), lambda i: (i, 0)),
        ),
        compiler_params=pltpu.CompilerParams(
            dimension_semantics=("parallel",),
            vmem_limit_bytes=_VMEM_LIMIT),
    )(um_hidden, w, b, nbrs)


# ----------------------------------------------------------------------------
# DepthPoseNet (synthetic deterministic weights)
# ----------------------------------------------------------------------------
def disp_to_depth(disp, min_depth, max_depth):
    min_disp = 1.0 / max_depth
    max_disp = 1.0 / min_depth
    scaled_disp = min_disp + (max_disp - min_disp) * disp
    return scaled_disp, 1.0 / scaled_disp


class DepthPoseNetPallas:
    def __init__(self, version="it0-seq2", min_depth=0.1, max_depth=100.0,
                 key=jax.random.PRNGKey(42)):
        assert "it" in version
        self.min_depth = min_depth
        self.max_depth = max_depth
        self.iters = int(version.split("-")[0].split("it")[1])
        self.is_high = "h" in version
        self.out_normalize = "out" in version
        self.seq_len = 4
        for s in version.split("-"):
            if "seq" in s:
                self.seq_len = int(s.split("seq")[1])
        self.iters = self.iters // self.seq_len
        self.inter_sup = "inter" in version
        if self.out_normalize:
            self.scale_inv_depth = partial(disp_to_depth,
                                           min_depth=min_depth, max_depth=max_depth)
        else:
            self.scale_inv_depth = lambda x: (x, None)
        self.foutput_dim = 128
        self.feat_ratio = 8
        self.hdim = 128 if self.is_high else 64
        self.cdim = 32

        D, r = self.foutput_dim, self.feat_ratio
        ks = jax.random.split(key, 8)

        def conv_w(k, cin, cout, taps=9):
            return (jax.random.normal(k, (taps, cin, cout), jnp.float32)
                    / jnp.sqrt(jnp.float32(taps * cin)))

        # TODO(synk): ResNetEncoder internals are not in the reference snippet;
        # fnet is approximated as a single stride-8 patch conv + ReLU.
        w = conv_w(ks[0], r * r * 3, D, taps=1)[0]                       # (192, 128)
        self.fnet_w = jnp.pad(w, ((0, 256 - r * r * 3), (0, 0))).astype(jnp.bfloat16)
        self.fnet_b = jnp.zeros((1, D), jnp.float32)

        # Fused first 3x3 convs: DepthHead(128) | UpMaskNet(256) | PoseHead fmap1-half(128)
        dh_w1 = conv_w(ks[1], D, D)
        um_w1 = conv_w(ks[2], D, 256)
        ph_w1a = conv_w(ks[3], D, D)
        self.w1_fused = jnp.concatenate([dh_w1, um_w1, ph_w1a],
                                        axis=2).astype(jnp.bfloat16)     # (9,128,512)
        self.b1_fused = jnp.zeros((1, D + 256 + D), jnp.float32)

        # PoseHead: fmap_ref half of conv1, and conv2 used via linearity trick.
        self.ph_w1b = conv_w(ks[4], D, D).astype(jnp.bfloat16)           # (9,128,128)
        self.ph_b1 = jnp.zeros((1, D), jnp.float32)
        self.ph_w2 = conv_w(ks[5], D, 6).reshape(9 * D, 6)               # f32, tap-major
        self.ph_b2 = jnp.zeros((6,), jnp.float32)

        # DepthHead conv2 (D -> 1, N padded to 128 lanes).
        w = conv_w(ks[6], D, 1)
        self.dh_w2 = jnp.pad(w, ((0, 0), (0, 0), (0, 127))).astype(jnp.bfloat16)
        self.dh_b2 = jnp.zeros((1, 128), jnp.float32)

        # UpMaskNet conv2 (1x1, 256 -> 9*r*r, N padded to 640 lanes).
        rr9 = 9 * r * r
        np_um = _round_up(rr9, 128)
        w = conv_w(ks[7], 256, rr9, taps=1)[0]                           # (256, 576)
        self.um_w2 = jnp.pad(w, ((0, 0), (0, np_um - rr9))).astype(jnp.bfloat16)
        self.um_b2 = jnp.zeros((1, np_um), jnp.float32)

    # --------------------------- forward ------------------------------------
    def __call__(self, target_image, ref_imgs, intrinsics):
        B, C, H, W = target_image.shape
        n_ref = len(ref_imgs)
        r = self.feat_ratio
        D = self.foutput_dim
        Hf, Wf = H // r, W // r
        n_img = 1 + n_ref

        # ----------------------------------------------------------- fnet
        imgs = jnp.concatenate([target_image] + ref_imgs, axis=0)        # (n_img*B,3,H,W)
        Ball = n_img * B
        cols = (imgs.reshape(Ball, C, Hf, r, Wf, r)
                .transpose(0, 2, 4, 3, 5, 1)
                .reshape(Ball * Hf * Wf, r * r * C)).astype(jnp.bfloat16)
        M1 = Ball * Hf * Wf
        tm1 = _pick_tm(M1)
        Mp1 = _round_up(M1, tm1)
        cols = jnp.pad(cols, ((0, Mp1 - M1), (0, self.fnet_w.shape[0] - r * r * C)))
        fmap_flat = pallas_gemm(cols, self.fnet_w, self.fnet_b, tm=tm1,
                                act="relu", out_dtype=jnp.bfloat16)       # (Mp1, 128)
        fmaps = fmap_flat[:M1].reshape(Ball, Hf, Wf, D)
        assert H // fmaps.shape[1] == r

        # --------------------------------- flattened, halo-padded pixel space
        Hp, Wp = Hf + 2, Wf + 2
        Pp = B * Hp * Wp
        tm = max(_pick_tm(Pp), _round_up(Wf + 3, 8))
        Mp = _round_up(Pp, tm)
        rel_offs = tuple((dy - 1) * Wp + (dx - 1)
                         for dy in range(3) for dx in range(3))
        offs = tuple(tm + o for o in rel_offs)       # +tm: leading guard rows

        def to_guarded(fm):                          # (B,Hf,Wf,D) -> guarded flat bf16
            fp = jnp.pad(fm, ((0, 0), (1, 1), (1, 1), (0, 0))).reshape(Pp, D)
            return jnp.pad(fp, ((tm, tm + Mp - Pp), (0, 0)))

        x1 = to_guarded(fmaps[:B])
        x_refs = [to_guarded(fmaps[B * (i + 1):B * (i + 2)]) for i in range(n_ref)]

        # 0/1 row-validity mask (1 inside the image, 0 on halo / round-up rows)
        yv = (jnp.arange(Hp) >= 1) & (jnp.arange(Hp) <= Hf)
        xv = (jnp.arange(Wp) >= 1) & (jnp.arange(Wp) <= Wf)
        m2 = (yv[:, None] & xv[None, :]).astype(jnp.float32).reshape(1, Hp * Wp)
        mask = jnp.pad(jnp.tile(m2, (B, 1)).reshape(Pp), (0, Mp - Pp)).reshape(Mp, 1)

        # -------- fused first 3x3 convs of depth / upmask / pose(fmap1) heads
        h_d_g, um_h, ph_part = conv3x3(
            x1, self.w1_fused, self.b1_fused, Mp=Mp, tm=tm, offs=offs, mask=mask,
            col_splits=((0, D), (D, 256), (D + 256, D)),
            acts=("relu", "relu", "none"), scales=(1.0, 1.0, 1.0),
            out_dtypes=(jnp.bfloat16, jnp.bfloat16, jnp.float32),
            out_guard=(True, False, False))
        # h_d_g carries tm guard rows on both sides so the second depth conv can
        # index it directly; guard contents are never read for valid pixels.

        # ------------------------------------------------------------ pose head
        npix = Hf * Wf
        pose_list = []
        for xr in x_refs:
            (h_p,) = conv3x3(
                xr, self.ph_w1b, self.ph_b1, Mp=Mp, tm=tm, offs=offs,
                mask=mask, res=ph_part,
                col_splits=((0, D),), acts=("relu",), scales=(1.0,),
                out_dtypes=(jnp.bfloat16,), out_guard=(False,))
            # conv2 + spatial mean are linear: mean_p(conv2(h)) == mean_p(im2col(h)) @ W2 + b2
            hp = h_p[:Pp].astype(jnp.float32).reshape(B, Hp, Wp, D)
            sums = jnp.concatenate(
                [hp[:, dy:dy + Hf, dx:dx + Wf, :].sum(axis=(1, 2))
                 for dy in range(3) for dx in range(3)], axis=1)          # (B, 9D)
            pose = 0.01 * ((sums / npix) @ self.ph_w2 + self.ph_b2)       # (B, 6)
            pose_list.append(pose)

        # ----------------------------------------------------------- depth head
        (depth_full,) = conv3x3(
            h_d_g, self.dh_w2, self.dh_b2, Mp=Mp, tm=tm, offs=offs, mask=mask,
            col_splits=((0, 128),), acts=("sigmoid",), scales=(1.0,),
            out_dtypes=(jnp.float32,), out_guard=(False,))
        inv_depth_flat = depth_full[:, 0]                                 # (Mp,)

        # ------------------- upmask 1x1 conv fused with convex depth upsample
        g2 = Wf + 3
        dpad = jnp.pad(inv_depth_flat, (g2, g2))
        nbrs = jnp.stack([dpad[g2 + o:g2 + o + Mp] for o in rel_offs],
                         axis=1)                                          # (Mp, 9) f32
        # TODO(synk): real um_w2 weights must be column-permuted so output
        # channels are tap-major (k*r*r + sub) to match mask.view(N,1,9,r,r,H,W).
        up = upmask_convex(um_h, self.um_w2, self.um_b2, nbrs,
                           Mp=Mp, tm=tm, rr=r * r, scale=0.25)            # (Mp, r*r)

        up = up[:Pp].reshape(B, Hp, Wp, r, r)[:, 1:-1, 1:-1]              # (B,Hf,Wf,r,r)
        inv_depth_up = (up.transpose(0, 1, 3, 2, 4)
                        .reshape(B, r * Hf, r * Wf))[:, None]             # (B,1,H,W)

        inv_depth_predictions = [self.scale_inv_depth(inv_depth_up)[0]]
        pose_predictions = [list(pose_list)]

        # TODO(synk): iters > 0 needs Camera/Pose warping, grid_sample and the
        # GRU update blocks (not part of the provided snippet); "it0-seq2"
        # makes the refinement loop statically empty, matching PyTorch.
        assert self.iters == 0

        # inference-mode return (self.training == False)
        poses = jnp.stack(pose_predictions[-1], axis=1).reshape(B, n_ref, 6)
        return inv_depth_predictions[-1], poses


# ----------------------------------------------------------------------------
if __name__ == "__main__":
    key = jax.random.PRNGKey(0)
    k1, k2, k3 = jax.random.split(key, 3)

    B, C, H, W = 2, 3, 32, 32          # 32x32 images -> 4x4 feature maps (ratio 8)
    target_image = jax.random.normal(k1, (B, C, H, W), jnp.float32)
    ref_imgs = [jax.random.normal(k2, (B, C, H, W), jnp.float32),
                jax.random.normal(k3, (B, C, H, W), jnp.float32)]
    intrinsics = jnp.tile(jnp.eye(3, dtype=jnp.float32)[None], (B, 1, 1)) * 16.0

    net = DepthPoseNetPallas(version="it0-seq2", min_depth=0.1, max_depth=100.0)
    inv_depth, poses = net(target_image, ref_imgs, intrinsics)
    jax.block_until_ready(inv_depth)
    jax.block_until_ready(poses)

    assert inv_depth.shape == (B, 1, H, W)
    assert poses.shape == (B, len(ref_imgs), 6)
    assert bool(jnp.isfinite(inv_depth).all()) and bool(jnp.isfinite(poses).all())
    print("KERNEL_OK")
</pallas_src>

<mosaic_0001>
module attributes {stable_mosaic.version = 11 : i64} {
  func.func @_gemm_bias_act_kernel(%arg0: i32, %arg1: i32, %arg2: memref<96x256xbf16, #tpu.memory_space<vmem>>, %arg3: memref<256x128xbf16, #tpu.memory_space<vmem>>, %arg4: memref<1x128xf32, #tpu.memory_space<vmem>>, %arg5: memref<96x128xbf16, #tpu.memory_space<vmem>>) attributes {dimension_semantics = [#tpu.dimension_semantics<parallel>, #tpu.dimension_semantics<parallel>], iteration_bounds = array<i64: 1, 1>, scalar_prefetch = 0 : i64, scratch_operands = 0 : i64, tpu.core_type = #tpu.core_type<tc>, window_params = [{transform_indices = @transform_0, window_bounds = array<i64: 96, 256>}, {transform_indices = @transform_1, window_bounds = array<i64: 256, 128>}, {transform_indices = @transform_2, window_bounds = array<i64: 1, 128>}, {transform_indices = @transform_3, window_bounds = array<i64: 96, 128>}]} {
    %c0 = arith.constant 0 : index
    %c0_0 = arith.constant 0 : index
    %0 = vector.load %arg2[%c0, %c0_0] : memref<96x256xbf16, #tpu.memory_space<vmem>>, vector<96x256xbf16>
    %c0_1 = arith.constant 0 : index
    %c0_2 = arith.constant 0 : index
    %1 = vector.load %arg3[%c0_1, %c0_2] : memref<256x128xbf16, #tpu.memory_space<vmem>>, vector<256x128xbf16>
    %cst = arith.constant dense<0.000000e+00> : vector<96x128xf32>
    %2 = tpu.matmul %0, %1, %cst {dimension_numbers = #tpu.dot_dimension_numbers<[1], [0], [0], [1], [0, 0, 1, 1], [], []>} : vector<96x256xbf16>, vector<256x128xbf16>, vector<96x128xf32> -> vector<96x128xf32>
    %c0_3 = arith.constant 0 : index
    %c0_4 = arith.constant 0 : index
    %3 = vector.load %arg4[%c0_3, %c0_4] : memref<1x128xf32, #tpu.memory_space<vmem>>, vector<1x128xf32>
    %4 = vector.broadcast %3 : vector<1x128xf32> to vector<96x128xf32>
    %5 = arith.addf %2, %4 : vector<96x128xf32>
    %cst_5 = arith.constant 0.000000e+00 : f32
    %6 = vector.broadcast %cst_5 : f32 to vector<96x128xf32>
    %7 = arith.maximumf %5, %6 : vector<96x128xf32>
    %8 = arith.truncf %7 : vector<96x128xf32> to vector<96x128xbf16>
    %c0_6 = arith.constant 0 : index
    %c0_7 = arith.constant 0 : index
    %9 = vector.load %arg5[%c0_6, %c0_7] : memref<96x128xbf16, #tpu.memory_space<vmem>>, vector<96x128xbf16>
    tpu.vector_store %arg5[%c0_6, %c0_7], %8 {strides = array<i32>} : memref<96x128xbf16, #tpu.memory_space<vmem>>, vector<96x128xbf16>,
    return
  }
  func.func @transform_0(%arg0: i32, %arg1: i32) -> (i32, i32) {
    %c0_i32 = arith.constant 0 : i32
    %c0_i32_0 = arith.constant 0 : i32
    return %arg0, %c0_i32 : i32, i32
  }
  func.func @transform_1(%arg0: i32, %arg1: i32) -> (i32, i32) {
    %c0_i32 = arith.constant 0 : i32
    %c0_i32_0 = arith.constant 0 : i32
    return %c0_i32, %arg1 : i32, i32
  }
  func.func @transform_2(%arg0: i32, %arg1: i32) -> (i32, i32) {
    %c0_i32 = arith.constant 0 : i32
    %c0_i32_0 = arith.constant 0 : i32
    return %c0_i32, %arg1 : i32, i32
  }
  func.func @transform_3(%arg0: i32, %arg1: i32) -> (i32, i32) {
    %c0_i32 = arith.constant 0 : i32
    return %arg0, %arg1 : i32, i32
  }
}

</mosaic_0001>

<llo_original>
// kernel: tpu_custom_call.1
$region0: #{tpu_custom_call.1}
  #allocation0 [shape = 'u32[]', space=smem, size = 0x4, offset = 0x4, fixed_abs, tag = 'smem constant byte address 0x4 - core index']
  #allocation1 [shape = 'u32[144,128]{1,0:T(1,128)}', space=vmem, size = 0x12000, scoped, tag = 'internal scratch']
  %s0 = inlined_call_operand.hbm [shape: bf16[96,256], index: 0, kind: input, shape index: {}]
  %s1 = inlined_call_operand.hbm [shape: bf16[256,128], index: 1, kind: input, shape index: {}]
  %s2 = inlined_call_operand.vmem [shape: f32[1,128], index: 2, kind: input, shape index: {}]
  %s3 = inlined_call_operand.hbm [shape: bf16[96,128], index: 3, kind: output, shape index: {}]
  %s4 = sld [smem:[#allocation0]]
  $region30: #{tpu_custom_call.1} parent=0
    _
  %s6 = ssub.s32 1, %s4
  %s7 = scalar_select 0, %s6, %s4
  $region1: #{tpu_custom_call.1} parent=0
    #allocation2 [shape = 'u8[49152]{0}', space=vmem, size = 0xc000, scoped, tag = 'input window, operand 0, single buffered']
    #allocation3 [shape = 's32[1]{0}', space=sflag, size = 0x4, scoped, tag = 'scoped memory for tpu_custom_call.1']
    #allocation4 [shape = 's32[1]{0}', space=sflag, size = 0x4, scoped, tag = 'scoped memory for tpu_custom_call.1']
    #allocation5 [shape = 'u8[65536]{0}', space=vmem, size = 0x10000, scoped, tag = 'input window, operand 1, single buffered']
    #allocation6 [shape = 's32[1]{0}', space=sflag, size = 0x4, scoped, tag = 'scoped memory for tpu_custom_call.1']
    #allocation7 [shape = 'u8[24576]{0}', space=vmem, size = 0x6000, scoped, tag = 'output window, operand 0, single buffered']
    %8 = vsyncpa [#allocation3], 0
    %9 = vsyncpa [#allocation6], 0
    %10 = vsyncpa [#allocation4], 0
    // Predicated region
    $region2: #{tpu_custom_call.1} parent=1 // pred_check
      _
    $region3: #{tpu_custom_call.1} parent=1 // pred_check_branch
      %12 = sbr.rel (0) target = $region5
    $region4: #{tpu_custom_call.1} parent=1 // pred_region
      %s14 = ssub.s32 1536, 1536
      %15 = vsyncadd [#allocation3], %s14
      %s16 = sshll.u32 [#allocation2], 4
      %s17 = int_to_ptr.vmem [resolvable:$true] %s16
      %22 = dma.hbm_to_vmem [thread:$0]  %s0, 1536, %s17, [#allocation3], 128, 128, 8
    $region5: #{tpu_custom_call.1} parent=1 // pred_fallthru
      _
    // Predicated region
    $region6: #{tpu_custom_call.1} parent=1 // pred_check
      _
    $region7: #{tpu_custom_call.1} parent=1 // pred_check_branch
      %24 = sbr.rel (0) target = $region9
    $region8: #{tpu_custom_call.1} parent=1 // pred_region
      %s26 = ssub.s32 2048, 2048
      %27 = vsyncadd [#allocation6], %s26
      %s28 = sshll.u32 [#allocation5], 4
      %s29 = int_to_ptr.vmem [resolvable:$true] %s28
      %34 = dma.hbm_to_vmem [thread:$0]  %s1, 2048, %s29, [#allocation6], 64, 64, 4
    $region9: #{tpu_custom_call.1} parent=1 // pred_fallthru
      _
    // Predicated region
    $region10: #{tpu_custom_call.1} parent=1 // pred_check
      _
    $region11: #{tpu_custom_call.1} parent=1 // pred_check_branch
      %36 = sbr.rel (0) target = $region13
    $region12: #{tpu_custom_call.1} parent=1 // pred_region
      _
    $region13: #{tpu_custom_call.1} parent=1 // pred_fallthru
      _
    // Predicated region
    $region14: #{tpu_custom_call.1} parent=1 // pred_check
      _
    $region15: #{tpu_custom_call.1} parent=1 // pred_check_branch
      %38 = sbr.rel (0) target = $region17
    $region16: #{tpu_custom_call.1} parent=1 // pred_region
      %39 = dma.done [#allocation3], 1536
    $region17: #{tpu_custom_call.1} parent=1 // pred_fallthru
      _
    // Predicated region
    $region18: #{tpu_custom_call.1} parent=1 // pred_check
      _
    $region19: #{tpu_custom_call.1} parent=1 // pred_check_branch
      %41 = sbr.rel (0) target = $region21
    $region20: #{tpu_custom_call.1} parent=1 // pred_region
      %42 = dma.done [#allocation6], 2048
    $region21: #{tpu_custom_call.1} parent=1 // pred_fallthru
      _
    %v44 = vld [vmem:[#allocation2] sm:$0xff]
    %v45 = vld [vmem:[#allocation2 + $0x8] sm:$0xff]
    %v46 = vld [vmem:[#allocation2 + $0x10] sm:$0xff]
    %v47 = vld [vmem:[#allocation2 + $0x18] sm:$0xff]
    %v48 = vld [vmem:[#allocation2 + $0x20] sm:$0xff]
    %v49 = vld [vmem:[#allocation2 + $0x28] sm:$0xff]
    %v50 = vld [vmem:[#allocation2 + $0x30] sm:$0xff]
    %v51 = vld [vmem:[#allocation2 + $0x38] sm:$0xff]
    %v52 = vld [vmem:[#allocation2 + $0x40] sm:$0xff]
    %v53 = vld [vmem:[#allocation2 + $0x48] sm:$0xff]
    %v54 = vld [vmem:[#allocation2 + $0x50] sm:$0xff]
    %v55 = vld [vmem:[#allocation2 + $0x58] sm:$0xff]
    %v56 = vld [vmem:[#allocation5] sm:$0xf]
    %v57 = vld [vmem:[#allocation5 + $0x4] sm:$0xf]
    %v58 = vld [vmem:[#allocation5 + $0x8] sm:$0xf]
    %v59 = vld [vmem:[#allocation5 + $0xc] sm:$0xf]
    %v60 = vld [vmem:[#allocation5 + $0x10] sm:$0xf]
    %v61 = vld [vmem:[#allocation5 + $0x14] sm:$0xf]
    %v62 = vld [vmem:[#allocation5 + $0x18] sm:$0xf]
    %v63 = vld [vmem:[#allocation5 + $0x1c] sm:$0xf]
    %v64 = vld [vmem:[#allocation5 + $0x20] sm:$0xf]
    %v65 = vld [vmem:[#allocation5 + $0x24] sm:$0xf]
    %v66 = vld [vmem:[#allocation5 + $0x28] sm:$0xf]
    %v67 = vld [vmem:[#allocation5 + $0x2c] sm:$0xf]
    %v68 = vld [vmem:[#allocation5 + $0x30] sm:$0xf]
    %v69 = vld [vmem:[#allocation5 + $0x34] sm:$0xf]
    %v70 = vld [vmem:[#allocation5 + $0x38] sm:$0xf]
    %v71 = vld [vmem:[#allocation5 + $0x3c] sm:$0xf]
    %v72 = vld [vmem:[#allocation5 + $0x40] sm:$0xf]
    %v73 = vld [vmem:[#allocation5 + $0x44] sm:$0xf]
    %v74 = vld [vmem:[#allocation5 + $0x48] sm:$0xf]
    %v75 = vld [vmem:[#allocation5 + $0x4c] sm:$0xf]
    %v76 = vld [vmem:[#allocation5 + $0x50] sm:$0xf]
    %v77 = vld [vmem:[#allocation5 + $0x54] sm:$0xf]
    %v78 = vld [vmem:[#allocation5 + $0x58] sm:$0xf]
    %v79 = vld [vmem:[#allocation5 + $0x5c] sm:$0xf]
    %v80 = vld [vmem:[#allocation5 + $0x60] sm:$0xf]
    %v81 = vld [vmem:[#allocation5 + $0x64] sm:$0xf]
    %v82 = vld [vmem:[#allocation5 + $0x68] sm:$0xf]
    %v83 = vld [vmem:[#allocation5 + $0x6c] sm:$0xf]
    %v84 = vld [vmem:[#allocation5 + $0x70] sm:$0xf]
    %v85 = vld [vmem:[#allocation5 + $0x74] sm:$0xf]
    %v86 = vld [vmem:[#allocation5 + $0x78] sm:$0xf]
    %v87 = vld [vmem:[#allocation5 + $0x7c] sm:$0xf]
    %v88 = vld [vmem:[%s2] sm:$0x1]
    %v90 = vlaneseq
    %v91 = vshrl.u32 %v90, 7
    %v92 = vsub.s32 0, %v91
    %v93 = vrot.slane %v88, %v92
    %v107 = vunpack.c.l.b16 %v44
    %v108 = vunpack.c.h.b16 %v44
    %v109 = vunpack.c.l.b16 %v45
    %v110 = vunpack.c.h.b16 %v45
    %v111 = vunpack.c.l.b16 %v46
    %v112 = vunpack.c.h.b16 %v46
    %v113 = vunpack.c.l.b16 %v47
    %v114 = vunpack.c.h.b16 %v47
    %v115 = vunpack.c.l.b16 %v48
    %v116 = vunpack.c.h.b16 %v48
    %v117 = vunpack.c.l.b16 %v49
    %v118 = vunpack.c.h.b16 %v49
    %v119 = vunpack.c.l.b16 %v50
    %v120 = vunpack.c.h.b16 %v50
    %v121 = vunpack.c.l.b16 %v51
    %v122 = vunpack.c.h.b16 %v51
    %v123 = vunpack.c.l.b16 %v52
    %v124 = vunpack.c.h.b16 %v52
    %v125 = vunpack.c.l.b16 %v53
    %v126 = vunpack.c.h.b16 %v53
    %v127 = vunpack.c.l.b16 %v54
    %v128 = vunpack.c.h.b16 %v54
    %v129 = vunpack.c.l.b16 %v55
    %v130 = vunpack.c.h.b16 %v55
    %v131 = vpack.c.b16 %v109, %v107
    %v132 = vpack.c.b16 %v110, %v108
    %v133 = vpack.c.b16 %v113, %v111
    %v134 = vpack.c.b16 %v114, %v112
    %v135 = vpack.c.b16 %v117, %v115
    %v136 = vpack.c.b16 %v118, %v116
    %v137 = vpack.c.b16 %v121, %v119
    %v138 = vpack.c.b16 %v122, %v120
    %v139 = vpack.c.b16 %v125, %v123
    %v140 = vpack.c.b16 %v126, %v124
    %v141 = vpack.c.b16 %v129, %v127
    %v142 = vpack.c.b16 %v130, %v128
    %v187 = vunpack.c.l.b16 %v56
    %v188 = vunpack.c.l.b16 %v57
    %v189 = vunpack.c.l.b16 %v58
    %v190 = vunpack.c.l.b16 %v59
    %v191 = vunpack.c.l.b16 %v60
    %v192 = vunpack.c.l.b16 %v61
    %v193 = vunpack.c.l.b16 %v62
    %v194 = vunpack.c.l.b16 %v63
    %v195 = vunpack.c.l.b16 %v64
    %v196 = vunpack.c.l.b16 %v65
    %v197 = vunpack.c.l.b16 %v66
    %v198 = vunpack.c.l.b16 %v67
    %v199 = vunpack.c.l.b16 %v68
    %v200 = vunpack.c.l.b16 %v69
    %v201 = vunpack.c.l.b16 %v70
    %v202 = vunpack.c.l.b16 %v71
    %v203 = vunpack.c.l.b16 %v72
    %v204 = vunpack.c.l.b16 %v73
    %v205 = vunpack.c.l.b16 %v74
    %v206 = vunpack.c.l.b16 %v75
    %v207 = vunpack.c.l.b16 %v76
    %v208 = vunpack.c.l.b16 %v77
    %v209 = vunpack.c.l.b16 %v78
    %v210 = vunpack.c.l.b16 %v79
    %v211 = vunpack.c.l.b16 %v80
    %v212 = vunpack.c.l.b16 %v81
    %v213 = vunpack.c.l.b16 %v82
    %v214 = vunpack.c.l.b16 %v83
    %v215 = vunpack.c.l.b16 %v84
    %v216 = vunpack.c.l.b16 %v85
    %v217 = vunpack.c.l.b16 %v86
    %v218 = vunpack.c.l.b16 %v87
    %v219 = vpack.c.b16 %v188, %v187
    %v220 = vpack.c.b16 %v190, %v189
    %v221 = vpack.c.b16 %v192, %v191
    %v222 = vpack.c.b16 %v194, %v193
    %v223 = vpack.c.b16 %v196, %v195
    %v224 = vpack.c.b16 %v198, %v197
    %v225 = vpack.c.b16 %v200, %v199
    %v226 = vpack.c.b16 %v202, %v201
    %v227 = vpack.c.b16 %v204, %v203
    %v228 = vpack.c.b16 %v206, %v205
    %v229 = vpack.c.b16 %v208, %v207
    %v230 = vpack.c.b16 %v210, %v209
    %v231 = vpack.c.b16 %v212, %v211
    %v232 = vpack.c.b16 %v214, %v213
    %v233 = vpack.c.b16 %v216, %v215
    %v234 = vpack.c.b16 %v218, %v217
    %251 = vmatprep.subr.bf16.mxu0 0
    %252 = vmatpush1.bf16.msra.mxu0 %v219
    %253 = vmatprep.subr.bf16.mxu0 0
    %254 = vmatpush1.bf16.msra.mxu0 %v220
    %255 = vmatprep.subr.bf16.mxu0 0
    %256 = vmatpush1.bf16.msra.mxu0 %v221
    %257 = vmatprep.subr.bf16.mxu0 0
    %258 = vmatpush1.bf16.msra.mxu0 %v222
    %259 = vmatprep.subr.bf16.mxu0 0
    %260 = vmatpush1.bf16.msra.mxu0 %v223
    %261 = vmatprep.subr.bf16.mxu0 0
    %262 = vmatpush1.bf16.msra.mxu0 %v224
    %263 = vmatprep.subr.bf16.mxu0 0
    %264 = vmatpush1.bf16.msra.mxu0 %v225
    %265 = vmatprep.subr.bf16.mxu0 0
    %266 = vmatpush1.bf16.msra.mxu0 %v226
    %267 = vmatprep.subr.bf16.mxu0 0
    %268 = vmatpush1.bf16.msra.mxu0 %v227
    %269 = vmatprep.subr.bf16.mxu0 0
    %270 = vmatpush1.bf16.msra.mxu0 %v228
    %271 = vmatprep.subr.bf16.mxu0 0
    %272 = vmatpush1.bf16.msra.mxu0 %v229
    %273 = vmatprep.subr.bf16.mxu0 0
    %274 = vmatpush1.bf16.msra.mxu0 %v230
    %275 = vmatprep.subr.bf16.mxu0 0
    %276 = vmatpush1.bf16.msra.mxu0 %v231
    %277 = vmatprep.subr.bf16.mxu0 0
    %278 = vmatpush1.bf16.msra.mxu0 %v232
    %279 = vmatprep.subr.bf16.mxu0 0
    %280 = vmatpush1.bf16.msra.mxu0 %v233
    %281 = vmatprep.subr.bf16.mxu0 0
    %282 = vmatpush1.bf16.msra.mxu0 %v234
    %283 = vmatprep.mubr.bf16.mxu0 %v132
    %284 = vmatmul.mubr.bf16.gmra.mrb[0].mxu0 %v131
    %v285 = vpop.f32.mrb[0].mxu0
    %v286 = vadd.f32 %v93, %v285
    %v287 = vpop.f32.mrb[0].mxu0
    %v288 = vpop.f32.mrb[0].mxu0
    %v289 = vadd.f32 %v93, %v288
    %v290 = vpop.f32.mrb[0].mxu0
    %291 = vmatprep.mubr.bf16.mxu0 %v134
    %292 = vmatmul.mubr.bf16.gmra.mrb[0].mxu0 %v133
    %v293 = vpop.f32.mrb[0].mxu0
    %v294 = vadd.f32 %v93, %v293
    %v295 = vpop.f32.mrb[0].mxu0
    %v296 = vpop.f32.mrb[0].mxu0
    %v297 = vadd.f32 %v93, %v296
    %v298 = vpop.f32.mrb[0].mxu0
    %299 = vmatprep.mubr.bf16.mxu0 %v136
    %300 = vmatmul.mubr.bf16.gmra.mrb[0].mxu0 %v135
    %v301 = vpop.f32.mrb[0].mxu0
    %v302 = vadd.f32 %v93, %v301
    %v303 = vpop.f32.mrb[0].mxu0
    %v304 = vpop.f32.mrb[0].mxu0
    %v305 = vadd.f32 %v93, %v304
    %v306 = vpop.f32.mrb[0].mxu0
    %307 = vmatprep.mubr.bf16.mxu0 %v138
    %308 = vmatmul.mubr.bf16.gmra.mrb[0].mxu0 %v137
    %v309 = vpop.f32.mrb[0].mxu0
    %v310 = vadd.f32 %v93, %v309
    %v311 = vpop.f32.mrb[0].mxu0
    %v312 = vpop.f32.mrb[0].mxu0
    %v313 = vadd.f32 %v93, %v312
    %v314 = vpop.f32.mrb[0].mxu0
    %315 = vmatprep.mubr.bf16.mxu0 %v140
    %316 = vmatmul.mubr.bf16.gmra.mrb[0].mxu0 %v139
    %v317 = vpop.f32.mrb[0].mxu0
    %v318 = vadd.f32 %v93, %v317
    %v319 = vpop.f32.mrb[0].mxu0
    %v320 = vpop.f32.mrb[0].mxu0
    %v321 = vadd.f32 %v93, %v320
    %v322 = vpop.f32.mrb[0].mxu0
    %323 = vmatprep.mubr.bf16.mxu0 %v142
    %324 = vmatmul.mubr.bf16.gmra.mrb[0].mxu0 %v141
    %v325 = vpop.f32.mrb[0].mxu0
    %v326 = vadd.f32 %v93, %v325
    %v327 = vpop.f32.mrb[0].mxu0
    %v328 = vpop.f32.mrb[0].mxu0
    %v329 = vadd.f32 %v93, %v328
    %v330 = vpop.f32.mrb[0].mxu0
    %331 = vdwg.mxu0
    %v332 = vmax.f32 %v286, 0.0
    %v333 = vmax.f32 %v289, 0.0
    %v334 = vmax.f32 %v294, 0.0
    %v335 = vmax.f32 %v297, 0.0
    %v336 = vmax.f32 %v302, 0.0
    %v337 = vmax.f32 %v305, 0.0
    %v338 = vmax.f32 %v310, 0.0
    %v339 = vmax.f32 %v313, 0.0
    %v340 = vmax.f32 %v318, 0.0
    %v341 = vmax.f32 %v321, 0.0
    %v342 = vmax.f32 %v326, 0.0
    %v343 = vmax.f32 %v329, 0.0
    %v344 = vpack.c.bf16 %v333, %v332
    %v345 = vpack.c.bf16 %v335, %v334
    %v346 = vpack.c.bf16 %v337, %v336
    %v347 = vpack.c.bf16 %v339, %v338
    %v348 = vpack.c.bf16 %v341, %v340
    %v349 = vpack.c.bf16 %v343, %v342
    %v356 = vunpack.c.l.b16 %v344
    %v357 = vunpack.c.h.b16 %v344
    %v358 = vunpack.c.l.b16 %v345
    %v359 = vunpack.c.h.b16 %v345
    %v360 = vunpack.c.l.b16 %v346
    %v361 = vunpack.c.h.b16 %v346
    %v362 = vunpack.c.l.b16 %v347
    %v363 = vunpack.c.h.b16 %v347
    %v364 = vunpack.c.l.b16 %v348
    %v365 = vunpack.c.h.b16 %v348
    %v366 = vunpack.c.l.b16 %v349
    %v367 = vunpack.c.h.b16 %v349
    %v368 = vpack.c.b16 %v356, %v356
    %v369 = vpack.c.b16 %v357, %v357
    %v370 = vpack.c.b16 %v358, %v358
    %v371 = vpack.c.b16 %v359, %v359
    %v372 = vpack.c.b16 %v360, %v360
    %v373 = vpack.c.b16 %v361, %v361
    %v374 = vpack.c.b16 %v362, %v362
    %v375 = vpack.c.b16 %v363, %v363
    %v376 = vpack.c.b16 %v364, %v364
    %v377 = vpack.c.b16 %v365, %v365
    %v378 = vpack.c.b16 %v366, %v366
    %v379 = vpack.c.b16 %v367, %v367
    %392 = vst [vmem:[#allocation7] sm:$0xf] %v368
    %393 = vst [vmem:[#allocation7 + $0x4] sm:$0xf] %v369
    %394 = vst [vmem:[#allocation7 + $0x8] sm:$0xf] %v370
    %395 = vst [vmem:[#allocation7 + $0xc] sm:$0xf] %v371
    %396 = vst [vmem:[#allocation7 + $0x10] sm:$0xf] %v372
    %397 = vst [vmem:[#allocation7 + $0x14] sm:$0xf] %v373
    %398 = vst [vmem:[#allocation7 + $0x18] sm:$0xf] %v374
    %399 = vst [vmem:[#allocation7 + $0x1c] sm:$0xf] %v375
    %400 = vst [vmem:[#allocation7 + $0x20] sm:$0xf] %v376
    %401 = vst [vmem:[#allocation7 + $0x24] sm:$0xf] %v377
    %402 = vst [vmem:[#allocation7 + $0x28] sm:$0xf] %v378
    %403 = vst [vmem:[#allocation7 + $0x2c] sm:$0xf] %v379
    // Predicated region
    $region22: #{tpu_custom_call.1} parent=1 // pred_check
      _
    $region23: #{tpu_custom_call.1} parent=1 // pred_check_branch
      %405 = sbr.rel (0) target = $region25
    $region24: #{tpu_custom_call.1} parent=1 // pred_region
      %s407 = ssub.s32 768, 768
      %408 = vsyncadd [#allocation4], %s407
      %s409 = sshll.u32 [#allocation7], 4
      %s410 = int_to_ptr.vmem [resolvable:$true] %s409
      %415 = dma.vmem_to_hbm [thread:$0]  %s410, 768, %s3, [#allocation4], 64, 64, 4
    $region25: #{tpu_custom_call.1} parent=1 // pred_fallthru
      _
    // Predicated region
    $region26: #{tpu_custom_call.1} parent=1 // pred_check
      _
    $region27: #{tpu_custom_call.1} parent=1 // pred_check_branch
      %417 = sbr.rel (0) target = $region29
    $region28: #{tpu_custom_call.1} parent=1 // pred_region
      %418 = dma.done [#allocation4], 768
    $region29: #{tpu_custom_call.1} parent=1 // pred_fallthru
      _
    %419 = vsyncpa [#allocation3], 1
    %420 = vsyncpa [#allocation6], 1
    %421 = vsyncpa [#allocation4], 1

</llo_original>
